<compile_context>
chip_gen: v7x
topology: tpu7x:2x2x1
jax: 0.10.0
libtpu: 0.0.40
codegen_flags: <defaults>
</compile_context>

<pallas_src>
import jax
import jax.numpy as jnp
from jax.experimental import pallas as pl
from jax.experimental.pallas import tpu as pltpu

SMOOTH = 1e-6          # DiceLoss(smooth=1e-06)
BCE_WEIGHT = 0.5       # DiceBCELoss(bce_weight=0.5)
DICE_WEIGHT = 0.5      # DiceBCELoss(dice_weight=0.5)

LANES = 128            # lane dim of a vreg
ROW_ALIGN = 8          # sublane alignment for block rows
MAX_BLOCK_ROWS = 2048  # (2048,128) f32 = 1 MiB per pipeline buffer
NSPLIT = 2             # leading "parallel" axis; uses both TCs on v7x, harmless elsewhere
PAD_LOGIT = -1.0e4     # padding logit: exp(-|x|)=0, sigmoid=0, bce=0 exactly


def _round_up(x, m):
    return (x + m - 1) // m * m


def _cdiv(a, b):
    return (a + b - 1) // b


def _dice_bce_kernel(pred_ref, tgt_ref, out_ref, acc_ref):
    """Accumulates per-lane partials of (bce_sum, sig*t, sig, t) over the grid.

    acc_ref: (4, LANES) f32 VMEM scratch, one row per partial quantity.
    out_ref: (1, 4, LANES) block of the (NSPLIT, 4, LANES) partials output;
             written once per split, on the last step of the reduction axis.
    """
    i = pl.program_id(1)

    @pl.when(i == 0)
    def _init():
        acc_ref[...] = jnp.zeros_like(acc_ref)

    x = pred_ref[...].astype(jnp.float32)
    t = tgt_ref[...].astype(jnp.float32)

    # Shared EUP exp: e = exp(-|x|) is reused for both BCE and sigmoid.
    e = jnp.exp(-jnp.abs(x))
    # Numerically stable BCEWithLogits: max(x,0) - x*t + log(1 + exp(-|x|))
    bce = jnp.maximum(x, 0.0) - x * t + jnp.log1p(e)
    # sigmoid(x) without a second exp:  x>=0 -> 1/(1+e),  x<0 -> e/(1+e)
    inv = 1.0 / (1.0 + e)
    sig = jnp.where(x >= 0.0, inv, e * inv)

    # Per-lane partial sums (sublane-axis reduce only); accumulate with VPU adds.
    acc_ref[0:1, :] += jnp.sum(bce, axis=0, keepdims=True)
    acc_ref[1:2, :] += jnp.sum(sig * t, axis=0, keepdims=True)
    acc_ref[2:3, :] += jnp.sum(sig, axis=0, keepdims=True)
    acc_ref[3:4, :] += jnp.sum(t, axis=0, keepdims=True)

    @pl.when(i == pl.num_programs(1) - 1)
    def _finalize():
        out_ref[0] = acc_ref[...]


def dice_bce_loss(pred, target, bce_weight=BCE_WEIGHT, dice_weight=DICE_WEIGHT):
    assert pred.shape == target.shape
    n = pred.size

    # ---- lay out as lane-dense (padded_rows, 128) tiles, native dtype ----
    rows = _cdiv(n, LANES)
    block_rows = min(MAX_BLOCK_ROWS, _round_up(_cdiv(rows, NSPLIT), ROW_ALIGN))
    steps = _cdiv(rows, NSPLIT * block_rows)
    padded_rows = NSPLIT * steps * block_rows
    pad = padded_rows * LANES - n

    p_flat = pred.reshape(-1)
    t_flat = target.reshape(-1)
    if pad:
        # Padding contributes exactly zero to every partial sum:
        #   bce(PAD_LOGIT, 0) = 0,  sigmoid(PAD_LOGIT) = 0,  target pad = 0.
        p_flat = jnp.concatenate(
            [p_flat, jnp.full((pad,), PAD_LOGIT, dtype=pred.dtype)])
        t_flat = jnp.concatenate(
            [t_flat, jnp.zeros((pad,), dtype=target.dtype)])
    p2 = p_flat.reshape(padded_rows, LANES)
    t2 = t_flat.reshape(padded_rows, LANES)

    # ---- streaming reduction kernel -> (NSPLIT, 4, 128) per-lane partials ----
    partials = pl.pallas_call(
        _dice_bce_kernel,
        out_shape=jax.ShapeDtypeStruct((NSPLIT, 4, LANES), jnp.float32),
        grid_spec=pltpu.PrefetchScalarGridSpec(
            num_scalar_prefetch=0,
            grid=(NSPLIT, steps),
            in_specs=[
                pl.BlockSpec((block_rows, LANES),
                             lambda s, i: (s * steps + i, 0)),
                pl.BlockSpec((block_rows, LANES),
                             lambda s, i: (s * steps + i, 0)),
            ],
            out_specs=pl.BlockSpec((1, 4, LANES), lambda s, i: (s, 0, 0)),
            scratch_shapes=[pltpu.VMEM((4, LANES), jnp.float32)],
        ),
        compiler_params=pltpu.CompilerParams(
            dimension_semantics=("parallel", "arbitrary")),
    )(p2, t2)

    # ---- final cross-lane / cross-split reduce + scalar combine (tiny) ----
    sums = jnp.sum(partials, axis=(0, 2))          # (4,)
    bce_mean = sums[0] / jnp.float32(n)
    # sigmoid(pred) is in [0,1], so the DiceLoss re-sigmoid branch never fires
    # (matches the PyTorch DiceBCELoss path).
    dice = (2.0 * sums[1] + SMOOTH) / (sums[2] + sums[3] + SMOOTH)
    return bce_weight * bce_mean + dice_weight * (1.0 - dice)


def _reference(pred, target):
    x = pred.astype(jnp.float32)
    t = target.astype(jnp.float32)
    bce = jnp.mean(jnp.maximum(x, 0.0) - x * t + jnp.log1p(jnp.exp(-jnp.abs(x))))
    sig = jax.nn.sigmoid(x)
    inter = jnp.sum(sig * t)
    union = jnp.sum(sig) + jnp.sum(t)
    dice = (2.0 * inter + SMOOTH) / (union + SMOOTH)
    return BCE_WEIGHT * bce + DICE_WEIGHT * (1.0 - dice)


if __name__ == "__main__":
    key = jax.random.PRNGKey(0)
    k1, k2, k3, k4 = jax.random.split(key, 4)

    # Main check: NCHW logits / binary mask like the PyTorch module.
    pred = jax.random.normal(k1, (2, 4, 16, 16), dtype=jnp.float32) * 2.0
    target = (jax.random.uniform(k2, (2, 4, 16, 16)) > 0.5).astype(jnp.float32)
    loss = jax.block_until_ready(dice_bce_loss(pred, target))
    ref = jax.block_until_ready(_reference(pred, target))
    assert jnp.allclose(loss, ref, rtol=1e-4, atol=1e-5), (loss, ref)

    # Ragged-size check: exercises the neutral-padding path (300 elements).
    pred2 = jax.random.normal(k3, (1, 3, 10, 10), dtype=jnp.float32) * 3.0
    target2 = (jax.random.uniform(k4, (1, 3, 10, 10)) > 0.5).astype(jnp.float32)
    loss2 = jax.block_until_ready(dice_bce_loss(pred2, target2))
    ref2 = jax.block_until_ready(_reference(pred2, target2))
    assert jnp.allclose(loss2, ref2, rtol=1e-4, atol=1e-5), (loss2, ref2)

    print("KERNEL_OK")
</pallas_src>

<mosaic_0001>
module attributes {stable_mosaic.version = 11 : i64} {
  func.func @_dice_bce_kernel(%arg0: i32, %arg1: i32, %arg2: memref<8x128xf32, #tpu.memory_space<vmem>>, %arg3: memref<8x128xf32, #tpu.memory_space<vmem>>, %arg4: memref<1x4x128xf32, #tpu.memory_space<vmem>>, %arg5: memref<4x128xf32, #tpu.memory_space<vmem>>) attributes {dimension_semantics = [#tpu.dimension_semantics<parallel>, #tpu.dimension_semantics<arbitrary>], iteration_bounds = array<i64: 2, 1>, scalar_prefetch = 0 : i64, scratch_operands = 1 : i64, tpu.core_type = #tpu.core_type<tc>, window_params = [{transform_indices = @transform_0, window_bounds = array<i64: 8, 128>}, {transform_indices = @transform_1, window_bounds = array<i64: 8, 128>}, {transform_indices = @transform_2, window_bounds = array<i64: 1, 4, 128>}]} {
    %c0_i32 = arith.constant 0 : i32
    %0 = arith.cmpi eq, %arg1, %c0_i32 : i32
    %1 = arith.extui %0 : i1 to i32
    %c0_i32_0 = arith.constant 0 : i32
    %2 = arith.cmpi ne, %1, %c0_i32_0 : i32
    scf.if %2 {
      %cst_27 = arith.constant 0.000000e+00 : f32
      %47 = vector.broadcast %cst_27 : f32 to vector<4x128xf32>
      %c0_28 = arith.constant 0 : index
      %c0_29 = arith.constant 0 : index
      %48 = vector.load %arg5[%c0_28, %c0_29] : memref<4x128xf32, #tpu.memory_space<vmem>>, vector<4x128xf32>
      tpu.vector_store %arg5[%c0_28, %c0_29], %47 {strides = array<i32>} : memref<4x128xf32, #tpu.memory_space<vmem>>, vector<4x128xf32>,
    } else {
    }
    %c0 = arith.constant 0 : index
    %c0_1 = arith.constant 0 : index
    %3 = vector.load %arg2[%c0, %c0_1] : memref<8x128xf32, #tpu.memory_space<vmem>>, vector<8x128xf32>
    %c0_2 = arith.constant 0 : index
    %c0_3 = arith.constant 0 : index
    %4 = vector.load %arg3[%c0_2, %c0_3] : memref<8x128xf32, #tpu.memory_space<vmem>>, vector<8x128xf32>
    %5 = math.absf %3 : vector<8x128xf32>
    %cst = arith.constant 0.000000e+00 : f32
    %6 = vector.broadcast %cst : f32 to vector<8x128xf32>
    %7 = arith.subf %6, %5 : vector<8x128xf32>
    %8 = math.exp %7 : vector<8x128xf32>
    %cst_4 = arith.constant 0.000000e+00 : f32
    %9 = vector.broadcast %cst_4 : f32 to vector<8x128xf32>
    %10 = arith.maximumf %3, %9 : vector<8x128xf32>
    %11 = arith.mulf %3, %4 : vector<8x128xf32>
    %12 = arith.subf %10, %11 : vector<8x128xf32>
    %13 = math.log1p %8 : vector<8x128xf32>
    %14 = arith.addf %12, %13 : vector<8x128xf32>
    %cst_5 = arith.constant 1.000000e+00 : f32
    %15 = vector.broadcast %cst_5 : f32 to vector<8x128xf32>
    %16 = arith.addf %15, %8 : vector<8x128xf32>
    %cst_6 = arith.constant 1.000000e+00 : f32
    %17 = vector.broadcast %cst_6 : f32 to vector<8x128xf32>
    %18 = arith.divf %17, %16 : vector<8x128xf32>
    %cst_7 = arith.constant 0.000000e+00 : f32
    %19 = vector.broadcast %cst_7 : f32 to vector<8x128xf32>
    %20 = arith.cmpf oge, %3, %19 : vector<8x128xf32>
    %21 = arith.mulf %8, %18 : vector<8x128xf32>
    %22 = arith.select %20, %18, %21 : vector<8x128xi1>, vector<8x128xf32>
    %c0_8 = arith.constant 0 : index
    %c0_9 = arith.constant 0 : index
    %23 = vector.load %arg5[%c0_8, %c0_9] : memref<4x128xf32, #tpu.memory_space<vmem>>, vector<1x128xf32>
    %cst_10 = arith.constant dense<0.000000e+00> : vector<128xf32>
    %24 = vector.multi_reduction <add>, %14, %cst_10 [0] : vector<8x128xf32> to vector<128xf32>
    %25 = vector.shape_cast %24 : vector<128xf32> to vector<1x128xf32>
    %26 = arith.addf %23, %25 : vector<1x128xf32>
    %c0_11 = arith.constant 0 : index
    %c0_12 = arith.constant 0 : index
    %27 = vector.load %arg5[%c0_11, %c0_12] : memref<4x128xf32, #tpu.memory_space<vmem>>, vector<1x128xf32>
    tpu.vector_store %arg5[%c0_11, %c0_12], %26 {strides = array<i32>} : memref<4x128xf32, #tpu.memory_space<vmem>>, vector<1x128xf32>,
    %c1 = arith.constant 1 : index
    %c0_13 = arith.constant 0 : index
    %28 = vector.load %arg5[%c1, %c0_13] : memref<4x128xf32, #tpu.memory_space<vmem>>, vector<1x128xf32>
    %29 = arith.mulf %22, %4 : vector<8x128xf32>
    %cst_14 = arith.constant dense<0.000000e+00> : vector<128xf32>
    %30 = vector.multi_reduction <add>, %29, %cst_14 [0] : vector<8x128xf32> to vector<128xf32>
    %31 = vector.shape_cast %30 : vector<128xf32> to vector<1x128xf32>
    %32 = arith.addf %28, %31 : vector<1x128xf32>
    %c1_15 = arith.constant 1 : index
    %c0_16 = arith.constant 0 : index
    %33 = vector.load %arg5[%c1_15, %c0_16] : memref<4x128xf32, #tpu.memory_space<vmem>>, vector<1x128xf32>
    tpu.vector_store %arg5[%c1_15, %c0_16], %32 {strides = array<i32>} : memref<4x128xf32, #tpu.memory_space<vmem>>, vector<1x128xf32>,
    %c2 = arith.constant 2 : index
    %c0_17 = arith.constant 0 : index
    %34 = vector.load %arg5[%c2, %c0_17] : memref<4x128xf32, #tpu.memory_space<vmem>>, vector<1x128xf32>
    %cst_18 = arith.constant dense<0.000000e+00> : vector<128xf32>
    %35 = vector.multi_reduction <add>, %22, %cst_18 [0] : vector<8x128xf32> to vector<128xf32>
    %36 = vector.shape_cast %35 : vector<128xf32> to vector<1x128xf32>
    %37 = arith.addf %34, %36 : vector<1x128xf32>
    %c2_19 = arith.constant 2 : index
    %c0_20 = arith.constant 0 : index
    %38 = vector.load %arg5[%c2_19, %c0_20] : memref<4x128xf32, #tpu.memory_space<vmem>>, vector<1x128xf32>
    tpu.vector_store %arg5[%c2_19, %c0_20], %37 {strides = array<i32>} : memref<4x128xf32, #tpu.memory_space<vmem>>, vector<1x128xf32>,
    %c3 = arith.constant 3 : index
    %c0_21 = arith.constant 0 : index
    %39 = vector.load %arg5[%c3, %c0_21] : memref<4x128xf32, #tpu.memory_space<vmem>>, vector<1x128xf32>
    %cst_22 = arith.constant dense<0.000000e+00> : vector<128xf32>
    %40 = vector.multi_reduction <add>, %4, %cst_22 [0] : vector<8x128xf32> to vector<128xf32>
    %41 = vector.shape_cast %40 : vector<128xf32> to vector<1x128xf32>
    %42 = arith.addf %39, %41 : vector<1x128xf32>
    %c3_23 = arith.constant 3 : index
    %c0_24 = arith.constant 0 : index
    %43 = vector.load %arg5[%c3_23, %c0_24] : memref<4x128xf32, #tpu.memory_space<vmem>>, vector<1x128xf32>
    tpu.vector_store %arg5[%c3_23, %c0_24], %42 {strides = array<i32>} : memref<4x128xf32, #tpu.memory_space<vmem>>, vector<1x128xf32>,
    %c0_i32_25 = arith.constant 0 : i32
    %44 = arith.cmpi eq, %arg1, %c0_i32_25 : i32
    %45 = arith.extui %44 : i1 to i32
    %c0_i32_26 = arith.constant 0 : i32
    %46 = arith.cmpi ne, %45, %c0_i32_26 : i32
    scf.if %46 {
      %c0_27 = arith.constant 0 : index
      %c0_28 = arith.constant 0 : index
      %47 = vector.load %arg5[%c0_27, %c0_28] : memref<4x128xf32, #tpu.memory_space<vmem>>, vector<4x128xf32>
      %c0_29 = arith.constant 0 : index
      %c0_30 = arith.constant 0 : index
      %c0_31 = arith.constant 0 : index
      %48 = vector.load %arg4[%c0_29, %c0_30, %c0_31] : memref<1x4x128xf32, #tpu.memory_space<vmem>>, vector<1x4x128xf32>
      %49 = vector.shape_cast %48 : vector<1x4x128xf32> to vector<4x128xf32>
      %50 = vector.shape_cast %47 : vector<4x128xf32> to vector<1x4x128xf32>
      tpu.vector_store %arg4[%c0_29, %c0_30, %c0_31], %50 {strides = array<i32>} : memref<1x4x128xf32, #tpu.memory_space<vmem>>, vector<1x4x128xf32>,
    } else {
    }
    return
  }
  func.func @transform_0(%arg0: i32, %arg1: i32) -> (i32, i32) {
    %c1_i32 = arith.constant 1 : i32
    %0 = arith.muli %arg0, %c1_i32 : i32
    %1 = arith.addi %0, %arg1 : i32
    %c0_i32 = arith.constant 0 : i32
    %c0_i32_0 = arith.constant 0 : i32
    return %1, %c0_i32 : i32, i32
  }
  func.func @transform_1(%arg0: i32, %arg1: i32) -> (i32, i32) {
    %c1_i32 = arith.constant 1 : i32
    %0 = arith.muli %arg0, %c1_i32 : i32
    %1 = arith.addi %0, %arg1 : i32
    %c0_i32 = arith.constant 0 : i32
    %c0_i32_0 = arith.constant 0 : i32
    return %1, %c0_i32 : i32, i32
  }
  func.func @transform_2(%arg0: i32, %arg1: i32) -> (i32, i32, i32) {
    %c0_i32 = arith.constant 0 : i32
    %c0_i32_0 = arith.constant 0 : i32
    %c0_i32_1 = arith.constant 0 : i32
    return %arg0, %c0_i32, %c0_i32_0 : i32, i32, i32
  }
}

</mosaic_0001>

<llo_original>
// kernel: tpu_custom_call.1
$region0: #{tpu_custom_call.1}
  #allocation0 [shape = 'u32[]', space=smem, size = 0x4, offset = 0x4, fixed_abs, tag = 'smem constant byte address 0x4 - core index']
  #allocation1 [shape = 'u32[144,128]{1,0:T(1,128)}', space=vmem, size = 0x12000, scoped, tag = 'internal scratch']
  #allocation2 [shape = 'f32[4,128]{1,0:T(4,128)}', space=vmem, size = 0x800, scoped, tag = 'scratch operand']
  %s0 = inlined_call_operand.hbm [shape: f32[16,128], index: 0, kind: input, shape index: {}]
  %s1 = inlined_call_operand.hbm [shape: f32[16,128], index: 1, kind: input, shape index: {}]
  %s2 = inlined_call_operand.hbm [shape: f32[2,4,128], index: 2, kind: output, shape index: {}]
  %s3 = sld [smem:[#allocation0]]
  $region57: #{tpu_custom_call.1} parent=0
    _
  %s5 = ssub.s32 1, %s3
  %s6 = scalar_select 0, %s5, %s3
  $region1: #{tpu_custom_call.1} parent=0
    #allocation3 [shape = 'u8[8192]{0}', space=vmem, size = 0x2000, scoped, tag = 'input window, operand 0']
    #allocation4 [shape = 's32[2]{0}', space=sflag, size = 0x8, scoped, tag = 'scoped memory for tpu_custom_call.1']
    #allocation5 [shape = 's32[2]{0}', space=sflag, size = 0x8, scoped, tag = 'scoped memory for tpu_custom_call.1']
    #allocation6 [shape = 'u8[8192]{0}', space=vmem, size = 0x2000, scoped, tag = 'input window, operand 1']
    #allocation7 [shape = 's32[2]{0}', space=sflag, size = 0x8, scoped, tag = 'scoped memory for tpu_custom_call.1']
    #allocation8 [shape = 'u8[4096]{0}', space=vmem, size = 0x1000, scoped, tag = 'output window, operand 0']
    %7 = vsyncpa [#allocation4], 0
    %s8 = scalar_lea.sflag [#allocation4], 1
    %9 = vsyncpa %s8, 0
    %10 = vsyncpa [#allocation7], 0
    %s11 = scalar_lea.sflag [#allocation7], 1
    %12 = vsyncpa %s11, 0
    %13 = vsyncpa [#allocation5], 0
    %s14 = scalar_lea.sflag [#allocation5], 1
    %15 = vsyncpa %s14, 0
    loop: start=0, step=1, limit=4
    $region2: #{tpu_custom_call.1} parent=1 // loop_pre_header
      _
    $region3: #{tpu_custom_call.1} parent=1 // loop_header
      %s17 = sphi 0, %s21
      %p18 = scmp.ge.s32.totalorder %s17, 4
      %s24 = sphi 0, %s36
      %s25 = sphi 0, %s32
      %s26 = sphi 0, %s24
      %s27 = sphi 0, %s25
      %s28 = sphi 0, %s26
      %s29 = sphi 0, %s27
      %s41 = sphi 0, %s43
      %s44 = sphi 0, %s41
      %s45 = sphi 0, %s44
      %s61 = sphi 0, %s45
      %s69 = sphi 0, %s71
      %s72 = sphi 0, %s69
      %s73 = sphi 0, %s72
      %s89 = sphi 0, %s73
      %s95 = sphi 0, %s97
      %s98 = sphi 0, %s95
      %s99 = sphi 0, %s98
      %s115 = sphi 0, %s99
    $region4: #{tpu_custom_call.1} parent=1 // loop_header_branch
      %20 = sbr.rel (%p18) target = $region8
    $region5: #{tpu_custom_call.1} parent=1 // loop_body
      %s22 = ssub.s32 %s17, 1
      %s23 = ssub.s32 %s17, 2
      %s30 = sadd.s32 1, %s25
      %p31 = scmp.ge.s32.totalorder %s30, 1
      %s32 = scalar_select %p31, 0, %s30
      %s33 = sadd.s32 1, %s24
      %s34 = scalar_select %p31, %s33, %s24
      %p35 = scmp.ge.s32.totalorder %s34, 2
      %s36 = scalar_select %p35, 0, %s34
      %s37 = sadd.s32 %s24, %s25
      %s38 = sadd.s32 %s36, %s32
      %s39 = ssub.s32 %s37, %s38
      %p40 = scmp.eq.s32.totalorder %s39, 0
      %s42 = sadd.s32 %s41, 1
      %s43 = scalar_select %p40, %s41, %s42
      %p46 = pneg %p40
      %p47 = scmp.eq.s32.totalorder %s17, 1
      %p48 = por %p46, %p47
      %p49 = scmp.ne.s32.totalorder %s41, %s44
      %p50 = scmp.eq.s32.totalorder %s17, 0
      %p51 = por %p49, %p50
      %p52 = scmp.ne.s32.totalorder %s41, %s44
      %p53 = scmp.eq.s32.totalorder %s22, 1
      %p54 = por %p52, %p53
      %p55 = scmp.ne.s32.totalorder %s44, %s45
      %p56 = scmp.eq.s32.totalorder %s22, 0
      %p57 = por %p55, %p56
      %p58 = scmp.ne.s32.totalorder %s44, %s45
      %p59 = scmp.eq.s32.totalorder %s23, 1
      %p60 = por %p58, %p59
      %p62 = scmp.ne.s32.totalorder %s45, %s61
      %p63 = scmp.eq.s32.totalorder %s23, 0
      %p64 = por %p62, %p63
      %s65 = sadd.s32 %s24, %s25
      %s66 = sadd.s32 %s36, %s32
      %s67 = ssub.s32 %s65, %s66
      %p68 = scmp.eq.s32.totalorder %s67, 0
      %s70 = sadd.s32 %s69, 1
      %s71 = scalar_select %p68, %s69, %s70
      %p74 = pneg %p68
      %p75 = scmp.eq.s32.totalorder %s17, 1
      %p76 = por %p74, %p75
      %p77 = scmp.ne.s32.totalorder %s69, %s72
      %p78 = scmp.eq.s32.totalorder %s17, 0
      %p79 = por %p77, %p78
      %p80 = scmp.ne.s32.totalorder %s69, %s72
      %p81 = scmp.eq.s32.totalorder %s22, 1
      %p82 = por %p80, %p81
      %p83 = scmp.ne.s32.totalorder %s72, %s73
      %p84 = scmp.eq.s32.totalorder %s22, 0
      %p85 = por %p83, %p84
      %p86 = scmp.ne.s32.totalorder %s72, %s73
      %p87 = scmp.eq.s32.totalorder %s23, 1
      %p88 = por %p86, %p87
      %p90 = scmp.ne.s32.totalorder %s73, %s89
      %p91 = scmp.eq.s32.totalorder %s23, 0
      %p92 = por %p90, %p91
      %s93 = ssub.s32 %s24, %s36
      %p94 = scmp.eq.s32.totalorder %s93, 0
      %s96 = sadd.s32 %s95, 1
      %s97 = scalar_select %p94, %s95, %s96
      %p100 = pneg %p94
      %p101 = scmp.eq.s32.totalorder %s17, 1
      %p102 = por %p100, %p101
      %p103 = scmp.ne.s32.totalorder %s95, %s98
      %p104 = scmp.eq.s32.totalorder %s17, 0
      %p105 = por %p103, %p104
      %p106 = scmp.ne.s32.totalorder %s95, %s98
      %p107 = scmp.eq.s32.totalorder %s22, 1
      %p108 = por %p106, %p107
      %p109 = scmp.ne.s32.totalorder %s98, %s99
      %p110 = scmp.eq.s32.totalorder %s22, 0
      %p111 = por %p109, %p110
      %p112 = scmp.ne.s32.totalorder %s98, %s99
      %p113 = scmp.eq.s32.totalorder %s23, 1
      %p114 = por %p112, %p113
      %p116 = scmp.ne.s32.totalorder %s99, %s115
      %p117 = scmp.eq.s32.totalorder %s23, 0
      %p118 = por %p116, %p117
      %p119 = scmp.le.s32.totalorder 1, %s17
      %p120 = scmp.lt.s32.totalorder %s17, 3
      %p121 = pnand %p119, %p120
      %p122 = pneg %p121
      // Predicated region
      $region9: #{tpu_custom_call.1} parent=5 // pred_check
        _
      $region10: #{tpu_custom_call.1} parent=5 // pred_check_branch
        %124 = sbr.rel (%p121) target = $region12
      $region11: #{tpu_custom_call.1} parent=5 // pred_region
        %s125 = ssub.s32 %s17, 1
      $region12: #{tpu_custom_call.1} parent=5 // pred_fallthru
        _
      %p126 = scmp.lt.s32.totalorder %s17, 2
      // Predicated region
      $region13: #{tpu_custom_call.1} parent=5 // pred_check
        %p127 = pneg %p126
      $region14: #{tpu_custom_call.1} parent=5 // pred_check_branch
        %129 = sbr.rel (%p127) target = $region16
      $region15: #{tpu_custom_call.1} parent=5 // pred_region
        // Predicated region
        $region17: #{tpu_custom_call.1} parent=15 // pred_check
          %p130 = pneg %p51
        $region18: #{tpu_custom_call.1} parent=15 // pred_check_branch
          %132 = sbr.rel (%p130) target = $region20
        $region19: #{tpu_custom_call.1} parent=15 // pred_region
          %s133 = sand.u32 %s41, 1
          %s134 = scalar_lea.sflag [#allocation4], %s133
          %s135 = sand.u32 %s41, 1
          %s136 = smul.addr %s135, 8
          %s137 = scalar_lea.vmem [#allocation3], %s136
          %s138 = sadd.s32 %s24, %s25
          %s140 = ssub.s32 128, 128
          %141 = vsyncadd %s134, %s140
          %s142 = smul.addr %s138, 128
          %s143 = scalar_lea.hbm %s0, %s142
          %s145 = sshll.u32 %s137, 4
          %s146 = int_to_ptr.vmem [resolvable:$true] %s145
          %148 = dma.hbm_to_vmem [thread:$0]  %s143, 128, %s146, %s134
        $region20: #{tpu_custom_call.1} parent=15 // pred_fallthru
          _
        // Predicated region
        $region21: #{tpu_custom_call.1} parent=15 // pred_check
          %p149 = pneg %p79
        $region22: #{tpu_custom_call.1} parent=15 // pred_check_branch
          %151 = sbr.rel (%p149) target = $region24
        $region23: #{tpu_custom_call.1} parent=15 // pred_region
          %s152 = sand.u32 %s69, 1
          %s153 = scalar_lea.sflag [#allocation7], %s152
          %s154 = sand.u32 %s69, 1
          %s155 = smul.addr %s154, 8
          %s156 = scalar_lea.vmem [#allocation6], %s155
          %s157 = sadd.s32 %s24, %s25
          %s159 = ssub.s32 128, 128
          %160 = vsyncadd %s153, %s159
          %s161 = smul.addr %s157, 128
          %s162 = scalar_lea.hbm %s1, %s161
          %s164 = sshll.u32 %s156, 4
          %s165 = int_to_ptr.vmem [resolvable:$true] %s164
          %167 = dma.hbm_to_vmem [thread:$0]  %s162, 128, %s165, %s153
        $region24: #{tpu_custom_call.1} parent=15 // pred_fallthru
          _
      $region16: #{tpu_custom_call.1} parent=5 // pred_fallthru
        _
      %p168 = scmp.le.s32.totalorder 1, %s17
      %p169 = scmp.lt.s32.totalorder %s17, 3
      %p170 = pnand %p168, %p169
      %p171 = pneg %p170
      // Predicated region
      $region25: #{tpu_custom_call.1} parent=5 // pred_check
        _
      $region26: #{tpu_custom_call.1} parent=5 // pred_check_branch
        %173 = sbr.rel (%p170) target = $region28
      $region27: #{tpu_custom_call.1} parent=5 // pred_region
        %s174 = ssub.s32 %s17, 1
        %s175 = sand.u32 %s44, 1
        %s176 = scalar_lea.sflag [#allocation4], %s175
        %s177 = sand.u32 %s44, 1
        %s178 = smul.addr %s177, 8
        %s179 = scalar_lea.vmem [#allocation3], %s178
        // Predicated region
        $region29: #{tpu_custom_call.1} parent=27 // pred_check
          %p180 = pneg %p57
        $region30: #{tpu_custom_call.1} parent=27 // pred_check_branch
          %182 = sbr.rel (%p180) target = $region32
        $region31: #{tpu_custom_call.1} parent=27 // pred_region
          %183 = dma.done %s176, 128
        $region32: #{tpu_custom_call.1} parent=27 // pred_fallthru
          _
        %s184 = sand.u32 %s72, 1
        %s185 = scalar_lea.sflag [#allocation7], %s184
        %s186 = sand.u32 %s72, 1
        %s187 = smul.addr %s186, 8
        %s188 = scalar_lea.vmem [#allocation6], %s187
        // Predicated region
        $region33: #{tpu_custom_call.1} parent=27 // pred_check
          %p189 = pneg %p85
        $region34: #{tpu_custom_call.1} parent=27 // pred_check_branch
          %191 = sbr.rel (%p189) target = $region36
        $region35: #{tpu_custom_call.1} parent=27 // pred_region
          %192 = dma.done %s185, 128
        $region36: #{tpu_custom_call.1} parent=27 // pred_fallthru
          _
        %s193 = sand.u32 %s44, 1
        %s194 = scalar_lea.sflag [#allocation4], %s193
        %s195 = sand.u32 %s44, 1
        %s196 = smul.addr %s195, 8
        %s197 = scalar_lea.vmem [#allocation3], %s196
        %p198 = pneg %p57
        %p199 = pneg %p54
        %s200 = sand.u32 %s72, 1
        %s201 = scalar_lea.sflag [#allocation7], %s200
        %s202 = sand.u32 %s72, 1
        %s203 = smul.addr %s202, 8
        %s204 = scalar_lea.vmem [#allocation6], %s203
        %p205 = pneg %p85
        %p206 = pneg %p82
        %p207 = pneg %p111
        %p208 = pneg %p108
        %s209 = sand.u32 %s98, 1
        %s210 = scalar_lea.sflag [#allocation5], %s209
        %s211 = sand.u32 %s98, 1
        %s212 = smul.addr %s211, 4
        %s213 = scalar_lea.vmem [#allocation8], %s212
        %s214 = sadd.s32 %s26, %s27
        %s215 = sadd.s32 %s26, %s27
        %p216 = scmp.eq.s32.totalorder %s27, 0
        // Predicated region
        $region37: #{tpu_custom_call.1} parent=27 // pred_check
          %p217 = pneg %p216
        $region38: #{tpu_custom_call.1} parent=27 // pred_check_branch
          %219 = sbr.rel (%p217) target = $region40
        $region39: #{tpu_custom_call.1} parent=27 // pred_region
          %220 = vst [vmem:[#allocation2] sm:$0xf] 0.0
        $region40: #{tpu_custom_call.1} parent=27 // pred_fallthru
          _
        %v221 = vld [vmem:[%s179] sm:$0xff]
        %v222 = vld [vmem:[%s188] sm:$0xff]
        %v223 = vand.u32 2147483647, %v221
        %v224 = vsub.f32 0.0, %v223
        %v225 = vmul.f32 %v224, 1.442695
        %v226 = vpow.pop %v225
        %v227 = vmax.f32 %v221, 0.0
        %v228 = vmul.f32 %v221, %v222
        %v229 = vsub.f32 %v227, %v228
        %v230 = vadd.f32 %v226, 1.0
        %v231 = vlog2.pop %v230
        %v232 = vmul.f32 %v231, 0.6931472
        %v233 = vmul.f32 -0.5, %v226
        %v234 = vadd.f32 %v233, 1.0
        %v235 = vmul.f32 %v234, %v226
        %v236 = vand.u32 2147483647, %v226
        %vm237 = vcmp.lt.f32.partialorder %v236, 0.0004427343
        %v238 = vsel %vm237, %v235, %v232
        %v239 = vadd.f32 %v229, %v238
        %v240 = vadd.f32 %v226, 1.0
        %v241 = vrcp.pop %v240
        %v242 = vmul.f32 1.0, %v241
        %vm243 = vcmp.ge.f32.partialorder %v221, 0.0
        %v244 = vmul.f32 %v226, %v242
        %v245 = vsel %vm243, %v242, %v244
        %v246 = vld [vmem:[#allocation2] sm:$0x1]
        %v247 = vrot.slane %v239, 4
        %v248 = vadd.f32 %v239, %v247
        %v249 = vrot.slane %v248, 2
        %v250 = vadd.f32 %v248, %v249
        %v251 = vrot.slane %v250, 1
        %v252 = vadd.f32 %v250, %v251
        %v253 = vadd.f32 %v246, %v252
        %254 = vst [vmem:[#allocation2] sm:$0x1] %v253
        %v255 = vld [vmem:[#allocation2 + $0x1] sm:$0x1]
        %v256 = vmul.f32 %v245, %v222
        %v257 = vrot.slane %v256, 4
        %v258 = vadd.f32 %v256, %v257
        %v259 = vrot.slane %v258, 2
        %v260 = vadd.f32 %v258, %v259
        %v261 = vrot.slane %v260, 1
        %v262 = vadd.f32 %v260, %v261
        %v263 = vadd.f32 %v255, %v262
        %264 = vst [vmem:[#allocation2 + $0x1] sm:$0x1] %v263
        %v265 = vld [vmem:[#allocation2 + $0x2] sm:$0x1]
        %v266 = vrot.slane %v245, 4
        %v267 = vadd.f32 %v245, %v266
        %v268 = vrot.slane %v267, 2
        %v269 = vadd.f32 %v267, %v268
        %v270 = vrot.slane %v269, 1
        %v271 = vadd.f32 %v269, %v270
        %v272 = vadd.f32 %v265, %v271
        %273 = vst [vmem:[#allocation2 + $0x2] sm:$0x1] %v272
        %v274 = vld [vmem:[#allocation2 + $0x3] sm:$0x1]
        %v275 = vrot.slane %v222, 4
        %v276 = vadd.f32 %v222, %v275
        %v277 = vrot.slane %v276, 2
        %v278 = vadd.f32 %v276, %v277
        %v279 = vrot.slane %v278, 1
        %v280 = vadd.f32 %v278, %v279
        %v281 = vadd.f32 %v274, %v280
        %282 = vst [vmem:[#allocation2 + $0x3] sm:$0x1] %v281
        // Predicated region
        $region41: #{tpu_custom_call.1} parent=27 // pred_check
          %p283 = pneg %p216
        $region42: #{tpu_custom_call.1} parent=27 // pred_check_branch
          %285 = sbr.rel (%p283) target = $region44
        $region43: #{tpu_custom_call.1} parent=27 // pred_region
          %v286 = vld [vmem:[#allocation2] sm:$0xf]
          %287 = vst [vmem:[%s213] sm:$0xf] %v286
        $region44: #{tpu_custom_call.1} parent=27 // pred_fallthru
          _
        %s288 = sand.u32 %s98, 1
        %s289 = scalar_lea.sflag [#allocation5], %s288
        %s290 = sand.u32 %s98, 1
        %s291 = smul.addr %s290, 4
        %s292 = scalar_lea.vmem [#allocation8], %s291
        // Predicated region
        $region45: #{tpu_custom_call.1} parent=27 // pred_check
          %p293 = pneg %p108
        $region46: #{tpu_custom_call.1} parent=27 // pred_check_branch
          %295 = sbr.rel (%p293) target = $region48
        $region47: #{tpu_custom_call.1} parent=27 // pred_region
          %s297 = ssub.s32 64, 64
          %298 = vsyncadd %s289, %s297
          %s299 = smul.addr %s26, 64
          %s300 = scalar_lea.hbm %s2, %s299
          %s302 = sshll.u32 %s292, 4
          %s303 = int_to_ptr.vmem [resolvable:$true] %s302
          %305 = dma.vmem_to_hbm [thread:$0]  %s303, 64, %s300, %s289
        $region48: #{tpu_custom_call.1} parent=27 // pred_fallthru
          _
      $region28: #{tpu_custom_call.1} parent=5 // pred_fallthru
        _
      %p306 = scmp.le.s32.totalorder 2, %s17
      // Predicated region
      $region49: #{tpu_custom_call.1} parent=5 // pred_check
        %p307 = pneg %p306
      $region50: #{tpu_custom_call.1} parent=5 // pred_check_branch
        %309 = sbr.rel (%p307) target = $region52
      $region51: #{tpu_custom_call.1} parent=5 // pred_region
        %s310 = ssub.s32 %s17, 2
        // Predicated region
        $region53: #{tpu_custom_call.1} parent=51 // pred_check
          %p311 = pneg %p114
        $region54: #{tpu_custom_call.1} parent=51 // pred_check_branch
          %313 = sbr.rel (%p311) target = $region56
        $region55: #{tpu_custom_call.1} parent=51 // pred_region
          %s314 = sand.u32 %s99, 1
          %s315 = scalar_lea.sflag [#allocation5], %s314
          %s316 = sand.u32 %s99, 1
          %s317 = smul.addr %s316, 4
          %s318 = scalar_lea.vmem [#allocation8], %s317
          %319 = dma.done %s315, 64
        $region56: #{tpu_custom_call.1} parent=51 // pred_fallthru
          _
      $region52: #{tpu_custom_call.1} parent=5 // pred_fallthru
        _
    $region6: #{tpu_custom_call.1} parent=1 // loop_footer
      %s21 = sadd.s32 1, %s17
    $region7: #{tpu_custom_call.1} parent=1 // loop_footer_branch
      %16 = sbr.rel target = $region3
    $region8: #{tpu_custom_call.1} parent=1 // loop_exit
      _
    %320 = vsyncpa [#allocation4], 1
    %s321 = scalar_lea.sflag [#allocation4], 1
    %322 = vsyncpa %s321, 1
    %323 = vsyncpa [#allocation7], 1
    %s324 = scalar_lea.sflag [#allocation7], 1
    %325 = vsyncpa %s324, 1
    %326 = vsyncpa [#allocation5], 1
    %s327 = scalar_lea.sflag [#allocation5], 1
    %328 = vsyncpa %s327, 1

</llo_original>
